<compile_context>
chip_gen: v7x
topology: tpu7x:2x2x1
jax: 0.10.0
libtpu: 0.0.40
codegen_flags: <defaults>
</compile_context>

<pallas_src>
import functools

import jax
import jax.numpy as jnp
from jax.experimental import pallas as pl
from jax.experimental.pallas import tpu as pltpu


class WaitForNextInputError(Exception):
    pass


def _largest_divisor_leq(n, cap):
    for d in range(min(n, cap), 0, -1):
        if n % d == 0:
            return d
    return 1


# ----------------------------------------------------------------------------
# Chunked scan kernel: Tt circular-buffer pushes + Tt wrapped-operator
# applications per grid step, with buffer and weights VMEM-resident.
# ----------------------------------------------------------------------------
def _ssm_scan_kernel(buf_in_ref, x_ref, w_ref, b_ref, buf_ref, y_ref, *,
                     n_states, batch):
    # buf_in_ref: (N*B, D)  bf16  initial buffer, state n in rows [n*B,(n+1)*B)
    # x_ref:      (Tt*B, D) f32   this chunk's latent states (t major, b minor)
    # w_ref:      (D, N*D)  bf16  wrapped Linear; block n in lanes [n*D,(n+1)*D)
    # b_ref:      (1, D)    f32   wrapped Linear bias
    # buf_ref:    (N*B, D)  bf16  resident output block = live circular buffer
    # y_ref:      (Tt*B, D) f32   wrapped-operator outputs for this chunk
    N, B = n_states, batch
    D = x_ref.shape[-1]
    Tt = x_ref.shape[0] // B
    c = pl.program_id(0)

    @pl.when(c == 0)
    def _():
        # Seed the resident buffer once per scan (buf_in has a constant
        # index_map, so it is DMA'd exactly once).
        buf_ref[...] = buf_in_ref[...]

    # State sequence visible during this chunk, oldest -> newest:
    #   rows [ j*B, (j+1)*B )  hold  buffer state j        for j <  N
    #                               x[j-N] (cast to bf16)  for j >= N
    x_bf = x_ref[...].astype(jnp.bfloat16)
    seq = jnp.concatenate([buf_ref[...], x_bf], axis=0)          # ((N+Tt)*B, D)

    # One big MXU matmul: every state's projection against all N weight blocks.
    # M=(N+Tt)*B, K=D, N_out=N*D  (vs M=B, N_out=D for per-step dots).
    proj = jnp.dot(seq, w_ref[...], preferred_element_type=jnp.float32)

    # Banded sum.  After pushing x[t] the buffer holds states t+1 .. t+N, so
    #   y[t] = bias + sum_n (state_{t+1+n} @ W_n)
    #        = bias + sum_n proj[(t+1+n)*B:(t+2+n)*B, n*D:(n+1)*D]
    acc = proj[B:(Tt + 1) * B, 0:D]
    for n in range(1, N):
        acc = acc + proj[(1 + n) * B:(1 + n + Tt) * B, n * D:(n + 1) * D]
    y_ref[...] = acc + b_ref[...]          # bias broadcast once per chunk

    # Carry the circular buffer: the last N states of the sequence.
    buf_ref[...] = seq[Tt * B:(Tt + N) * B, :]


@functools.partial(jax.jit, static_argnums=(4,))
def _ssm_scan_call(buf, xs, w, b, time_chunk):
    N, B, D = buf.shape
    T = xs.shape[0]
    Tt = time_chunk
    assert T % Tt == 0

    buf2 = buf.reshape(N * B, D)           # contiguous — free XLA reshape
    xs2 = xs.reshape(T * B, D)

    kernel = functools.partial(_ssm_scan_kernel, n_states=N, batch=B)

    grid_spec = pltpu.PrefetchScalarGridSpec(
        num_scalar_prefetch=0,
        grid=(T // Tt,),
        in_specs=[
            pl.BlockSpec((N * B, D), lambda c: (0, 0)),      # initial buffer
            pl.BlockSpec((Tt * B, D), lambda c: (c, 0)),     # x chunk
            pl.BlockSpec((D, N * D), lambda c: (0, 0)),      # weights (resident)
            pl.BlockSpec((1, D), lambda c: (0, 0)),          # bias (resident)
        ],
        out_specs=[
            pl.BlockSpec((N * B, D), lambda c: (0, 0)),      # live buffer (resident)
            pl.BlockSpec((Tt * B, D), lambda c: (c, 0)),     # y chunk
        ],
    )

    # Advisory cost for XLA scheduling around the scan.
    flops = 2 * (T // Tt) * (N + Tt) * B * D * (N * D)
    bytes_accessed = (
        D * N * D * 2            # weights (bf16)
        + D * 4                  # bias
        + 2 * N * B * D * 2      # buffer in + out (bf16)
        + 2 * T * B * D * 4      # x in + y out (f32)
    )
    cost = pl.CostEstimate(flops=flops, transcendentals=0,
                           bytes_accessed=bytes_accessed)

    # Explicit VMEM budget (resident weights/buffer + double-buffered x/y +
    # in-kernel seq/proj intermediates), floored at the v5e default and capped
    # at v7x physical VMEM.
    vmem_est = (
        2 * D * N * D * 2                    # weights (default double-buffered)
        + 4 * N * B * D * 2                  # buf_in + buf_out, double-buffered
        + 4 * Tt * B * D * 4                 # x + y blocks, double-buffered
        + (N + Tt) * B * D * 2               # seq (bf16)
        + (N + Tt) * B * N * D * 4           # proj (f32)
        + 4 * Tt * B * D * 4                 # acc / misc headroom
    )
    vmem_limit = min(64 * 1024 * 1024, max(16 * 1024 * 1024, 2 * vmem_est))

    new_buf2, ys2 = pl.pallas_call(
        kernel,
        grid_spec=grid_spec,
        out_shape=(
            jax.ShapeDtypeStruct((N * B, D), buf.dtype),
            jax.ShapeDtypeStruct((T * B, D), jnp.float32),
        ),
        compiler_params=pltpu.CompilerParams(
            dimension_semantics=("arbitrary",),
            vmem_limit_bytes=vmem_limit,
        ),
        cost_estimate=cost,
    )(buf2, xs2, w, b)

    return new_buf2.reshape(N, B, D), ys2.reshape(T, B, D)


def ssm_scan(buf, xs, w, b, *, max_time_chunk=8):
    """Run T circular-buffer pushes + wrapped-operator applications.

    buf: (N, B, D) bf16 circular buffer (oldest state first)
    xs:  (T, B, D) f32 latent states
    w:   (D, N*D) bf16 wrapped Linear (block n in output lanes [n*D,(n+1)*D))
    b:   (1, D)  f32 bias
    Returns (new_buf (N,B,D) bf16, ys (T,B,D) f32).
    """
    T = xs.shape[0]
    time_chunk = _largest_divisor_leq(T, max_time_chunk)
    return _ssm_scan_call(buf, xs, w, b, time_chunk)


# ----------------------------------------------------------------------------
# Stateful wrapper matching the PyTorch module's forward semantics.
# ----------------------------------------------------------------------------
class SSMOperatorPallas:
    """JAX/Pallas equivalent of the stateful PyTorch SSMOperator.

    The wrapped operator (arbitrary nn.Module in the original) is a Linear
    over the flattened buffer, stored pre-flattened in bf16 for the MXU
    (f32 accumulation in-kernel — an intentional precision tradeoff).
    """

    def __init__(self, num_of_latent_state, latent_dim, stride, batch, key):
        self._num_of_latent_state = num_of_latent_state
        self._latent_dim = latent_dim
        self._stride = stride
        self._current_filled_latent_state = 0
        # bf16 circular buffer: logical state n (0 = oldest) lives at [n].
        self._buffer = jnp.zeros(
            (num_of_latent_state, batch, latent_dim), jnp.bfloat16)
        # Latent states received but not yet flushed through the scan kernel.
        self._pending = []

        kw, kb = jax.random.split(key)
        w_blocks = (
            jax.random.normal(
                kw, (num_of_latent_state, latent_dim, latent_dim), jnp.float32
            ) * 0.02
        ).astype(jnp.bfloat16)
        self._w_blocks = w_blocks                       # (N, D, D) reference layout
        # Kernel layout (D, N*D): w[:, n*D:(n+1)*D] = w_blocks[n]
        self._w = jnp.transpose(w_blocks, (1, 0, 2)).reshape(
            latent_dim, num_of_latent_state * latent_dim)
        self._b = jax.random.normal(kb, (1, latent_dim), jnp.float32) * 0.02

    def __call__(self, x):
        # Every x is pushed into the circular buffer (via the scan kernel when
        # the pending chunk is flushed); the wrapped operator only runs once
        # the buffer has been filled — identical gating to the PyTorch module.
        self._pending.append(x)
        self._current_filled_latent_state += 1
        if self._current_filled_latent_state >= self._num_of_latent_state:
            xs = jnp.stack(self._pending)
            self._pending = []
            new_buf, ys = ssm_scan(self._buffer, xs, self._w, self._b)
            self._buffer = new_buf
            self._current_filled_latent_state -= self._stride
            return ys[-1]
        # TODO(synk): WaitForNextInputError control flow (raising based on the
        # stream position) has no in-kernel equivalent; it stays host-side.
        raise WaitForNextInputError()


# ----------------------------------------------------------------------------
# Pure-JAX reference (same bf16-state / bf16-weight / f32-accumulation path).
# ----------------------------------------------------------------------------
def _reference(buf0, xs, w_blocks, b):
    buf = buf0
    ys = []
    for t in range(xs.shape[0]):
        buf = jnp.concatenate(
            [buf[1:], xs[t:t + 1].astype(jnp.bfloat16)], axis=0)
        y = jnp.einsum("nbd,ndk->bk", buf, w_blocks,
                       preferred_element_type=jnp.float32) + b
        ys.append(y)
    return buf, jnp.stack(ys)


if __name__ == "__main__":
    batch, num_states, latent_dim, stride = 8, 8, 128, 2
    key = jax.random.PRNGKey(0)
    op = SSMOperatorPallas(num_states, latent_dim, stride, batch, key)

    # ---- 1) Stateful streaming path (matches the PyTorch forward semantics).
    n_calls = num_states + 2 * stride          # outputs at calls 8, 10, 12
    xs = jax.random.normal(
        jax.random.PRNGKey(1), (n_calls, batch, latent_dim), jnp.float32)

    buf0 = jnp.zeros((num_states, batch, latent_dim), jnp.bfloat16)
    ref_buf, ref_ys = _reference(buf0, xs, op._w_blocks, op._b)

    outs = {}
    for t in range(n_calls):
        try:
            outs[t] = op(xs[t])
        except WaitForNextInputError:
            pass

    expected_steps = {num_states - 1 + k * stride for k in range(3)}
    assert set(outs) == expected_steps, (sorted(outs), sorted(expected_steps))
    for t in sorted(expected_steps):
        y = jax.block_until_ready(outs[t])
        assert jnp.allclose(y, ref_ys[t], atol=5e-3, rtol=5e-3), f"y mismatch @ {t}"
    assert jnp.allclose(op._buffer.astype(jnp.float32),
                        ref_buf.astype(jnp.float32),
                        atol=1e-2, rtol=1e-2), "buffer mismatch (streaming)"

    # ---- 2) Multi-chunk scan: T=16, time_chunk=8 -> grid (2,); the buffer and
    #         the weights stay VMEM-resident across chunks.
    T = 2 * num_states
    xs2 = jax.random.normal(
        jax.random.PRNGKey(2), (T, batch, latent_dim), jnp.float32)
    ref_buf2, ref_ys2 = _reference(buf0, xs2, op._w_blocks, op._b)
    scan_buf, scan_ys = ssm_scan(buf0, xs2, op._w, op._b, max_time_chunk=8)
    scan_ys = jax.block_until_ready(scan_ys)
    assert jnp.allclose(scan_ys, ref_ys2, atol=5e-3, rtol=5e-3), "scan y mismatch"
    assert jnp.allclose(scan_buf.astype(jnp.float32),
                        ref_buf2.astype(jnp.float32),
                        atol=1e-2, rtol=1e-2), "scan buffer mismatch"

    print("KERNEL_OK")
</pallas_src>

<mosaic_0001>
module attributes {stable_mosaic.version = 11 : i64} {
  func.func @_ssm_scan_kernel(%arg0: i32, %arg1: memref<64x128xbf16, #tpu.memory_space<vmem>>, %arg2: memref<64x128xf32, #tpu.memory_space<vmem>>, %arg3: memref<128x1024xbf16, #tpu.memory_space<vmem>>, %arg4: memref<1x128xf32, #tpu.memory_space<vmem>>, %arg5: memref<64x128xbf16, #tpu.memory_space<vmem>>, %arg6: memref<64x128xf32, #tpu.memory_space<vmem>>) attributes {dimension_semantics = [#tpu.dimension_semantics<arbitrary>], iteration_bounds = array<i64: 1>, scalar_prefetch = 0 : i64, scratch_operands = 0 : i64, tpu.core_type = #tpu.core_type<tc>, window_params = [{pipeline_mode = #tpu.pipeline_mode<synchronous>, transform_indices = @transform_0, window_bounds = array<i64: 64, 128>}, {transform_indices = @transform_1, window_bounds = array<i64: 64, 128>}, {pipeline_mode = #tpu.pipeline_mode<synchronous>, transform_indices = @transform_2, window_bounds = array<i64: 128, 1024>}, {pipeline_mode = #tpu.pipeline_mode<synchronous>, transform_indices = @transform_3, window_bounds = array<i64: 1, 128>}, {pipeline_mode = #tpu.pipeline_mode<synchronous>, transform_indices = @transform_4, window_bounds = array<i64: 64, 128>}, {transform_indices = @transform_5, window_bounds = array<i64: 64, 128>}]} {
    %c0_i32 = arith.constant 0 : i32
    %0 = arith.cmpi eq, %arg0, %c0_i32 : i32
    %1 = arith.extui %0 : i1 to i32
    %c0_i32_0 = arith.constant 0 : i32
    %2 = arith.cmpi ne, %1, %c0_i32_0 : i32
    scf.if %2 {
      %c0_12 = arith.constant 0 : index
      %c0_13 = arith.constant 0 : index
      %30 = vector.load %arg1[%c0_12, %c0_13] : memref<64x128xbf16, #tpu.memory_space<vmem>>, vector<64x128xbf16>
      %c0_14 = arith.constant 0 : index
      %c0_15 = arith.constant 0 : index
      %31 = vector.load %arg5[%c0_14, %c0_15] : memref<64x128xbf16, #tpu.memory_space<vmem>>, vector<64x128xbf16>
      tpu.vector_store %arg5[%c0_14, %c0_15], %30 {strides = array<i32>} : memref<64x128xbf16, #tpu.memory_space<vmem>>, vector<64x128xbf16>,
    } else {
    }
    %c0 = arith.constant 0 : index
    %c0_1 = arith.constant 0 : index
    %3 = vector.load %arg2[%c0, %c0_1] : memref<64x128xf32, #tpu.memory_space<vmem>>, vector<64x128xf32>
    %4 = arith.truncf %3 : vector<64x128xf32> to vector<64x128xbf16>
    %c0_2 = arith.constant 0 : index
    %c0_3 = arith.constant 0 : index
    %5 = vector.load %arg5[%c0_2, %c0_3] : memref<64x128xbf16, #tpu.memory_space<vmem>>, vector<64x128xbf16>
    %6 = tpu.concatenate %5, %4 in 0 : vector<64x128xbf16>, vector<64x128xbf16> -> vector<128x128xbf16>
    %c0_4 = arith.constant 0 : index
    %c0_5 = arith.constant 0 : index
    %7 = vector.load %arg3[%c0_4, %c0_5] : memref<128x1024xbf16, #tpu.memory_space<vmem>>, vector<128x1024xbf16>
    %cst = arith.constant dense<0.000000e+00> : vector<128x1024xf32>
    %8 = tpu.matmul %6, %7, %cst {dimension_numbers = #tpu.dot_dimension_numbers<[1], [0], [0], [1], [0, 0, 1, 1], [], []>} : vector<128x128xbf16>, vector<128x1024xbf16>, vector<128x1024xf32> -> vector<128x1024xf32>
    %9 = vector.extract_strided_slice %8 {offsets = [8, 0], sizes = [64, 128], strides = [1, 1]} : vector<128x1024xf32> to vector<64x128xf32>
    %10 = vector.extract_strided_slice %8 {offsets = [16, 128], sizes = [64, 128], strides = [1, 1]} : vector<128x1024xf32> to vector<64x128xf32>
    %11 = arith.addf %9, %10 : vector<64x128xf32>
    %12 = vector.extract_strided_slice %8 {offsets = [24, 256], sizes = [64, 128], strides = [1, 1]} : vector<128x1024xf32> to vector<64x128xf32>
    %13 = arith.addf %11, %12 : vector<64x128xf32>
    %14 = vector.extract_strided_slice %8 {offsets = [32, 384], sizes = [64, 128], strides = [1, 1]} : vector<128x1024xf32> to vector<64x128xf32>
    %15 = arith.addf %13, %14 : vector<64x128xf32>
    %16 = vector.extract_strided_slice %8 {offsets = [40, 512], sizes = [64, 128], strides = [1, 1]} : vector<128x1024xf32> to vector<64x128xf32>
    %17 = arith.addf %15, %16 : vector<64x128xf32>
    %18 = vector.extract_strided_slice %8 {offsets = [48, 640], sizes = [64, 128], strides = [1, 1]} : vector<128x1024xf32> to vector<64x128xf32>
    %19 = arith.addf %17, %18 : vector<64x128xf32>
    %20 = vector.extract_strided_slice %8 {offsets = [56, 768], sizes = [64, 128], strides = [1, 1]} : vector<128x1024xf32> to vector<64x128xf32>
    %21 = arith.addf %19, %20 : vector<64x128xf32>
    %22 = vector.extract_strided_slice %8 {offsets = [64, 896], sizes = [64, 128], strides = [1, 1]} : vector<128x1024xf32> to vector<64x128xf32>
    %23 = arith.addf %21, %22 : vector<64x128xf32>
    %c0_6 = arith.constant 0 : index
    %c0_7 = arith.constant 0 : index
    %24 = vector.load %arg4[%c0_6, %c0_7] : memref<1x128xf32, #tpu.memory_space<vmem>>, vector<1x128xf32>
    %25 = vector.broadcast %24 : vector<1x128xf32> to vector<64x128xf32>
    %26 = arith.addf %23, %25 : vector<64x128xf32>
    %c0_8 = arith.constant 0 : index
    %c0_9 = arith.constant 0 : index
    %27 = vector.load %arg6[%c0_8, %c0_9] : memref<64x128xf32, #tpu.memory_space<vmem>>, vector<64x128xf32>
    tpu.vector_store %arg6[%c0_8, %c0_9], %26 {strides = array<i32>} : memref<64x128xf32, #tpu.memory_space<vmem>>, vector<64x128xf32>,
    %28 = vector.extract_strided_slice %6 {offsets = [64, 0], sizes = [64, 128], strides = [1, 1]} : vector<128x128xbf16> to vector<64x128xbf16>
    %c0_10 = arith.constant 0 : index
    %c0_11 = arith.constant 0 : index
    %29 = vector.load %arg5[%c0_10, %c0_11] : memref<64x128xbf16, #tpu.memory_space<vmem>>, vector<64x128xbf16>
    tpu.vector_store %arg5[%c0_10, %c0_11], %28 {strides = array<i32>} : memref<64x128xbf16, #tpu.memory_space<vmem>>, vector<64x128xbf16>,
    return
  }
  func.func @transform_0(%arg0: i32) -> (i32, i32) {
    %c0_i32 = arith.constant 0 : i32
    %c0_i32_0 = arith.constant 0 : i32
    %c0_i32_1 = arith.constant 0 : i32
    return %c0_i32, %c0_i32_0 : i32, i32
  }
  func.func @transform_1(%arg0: i32) -> (i32, i32) {
    %c0_i32 = arith.constant 0 : i32
    %c0_i32_0 = arith.constant 0 : i32
    return %arg0, %c0_i32 : i32, i32
  }
  func.func @transform_2(%arg0: i32) -> (i32, i32) {
    %c0_i32 = arith.constant 0 : i32
    %c0_i32_0 = arith.constant 0 : i32
    %c0_i32_1 = arith.constant 0 : i32
    return %c0_i32, %c0_i32_0 : i32, i32
  }
  func.func @transform_3(%arg0: i32) -> (i32, i32) {
    %c0_i32 = arith.constant 0 : i32
    %c0_i32_0 = arith.constant 0 : i32
    %c0_i32_1 = arith.constant 0 : i32
    return %c0_i32, %c0_i32_0 : i32, i32
  }
  func.func @transform_4(%arg0: i32) -> (i32, i32) {
    %c0_i32 = arith.constant 0 : i32
    %c0_i32_0 = arith.constant 0 : i32
    %c0_i32_1 = arith.constant 0 : i32
    return %c0_i32, %c0_i32_0 : i32, i32
  }
  func.func @transform_5(%arg0: i32) -> (i32, i32) {
    %c0_i32 = arith.constant 0 : i32
    %c0_i32_0 = arith.constant 0 : i32
    return %arg0, %c0_i32 : i32, i32
  }
}

</mosaic_0001>

<llo_original>
// kernel: _ssm_scan_call.1
$region0: #{_ssm_scan_call.1}
  #allocation0 [shape = 'u32[]', space=smem, size = 0x4, offset = 0x4, fixed_abs, tag = 'smem constant byte address 0x4 - core index']
  #allocation1 [shape = 'u32[144,128]{1,0:T(1,128)}', space=vmem, size = 0x12000, scoped, tag = 'internal scratch']
  %s0 = inlined_call_operand.hbm [shape: bf16[64,128], index: 0, kind: input, shape index: {}]
  %s1 = inlined_call_operand.hbm [shape: f32[64,128], index: 1, kind: input, shape index: {}]
  %s2 = inlined_call_operand.hbm [shape: bf16[128,1024], index: 2, kind: input, shape index: {}]
  %s3 = inlined_call_operand.vmem [shape: f32[1,128], index: 3, kind: input, shape index: {}]
  %s4 = inlined_call_operand.hbm [shape: bf16[64,128], index: 4, kind: output, shape index: {0}]
  %s5 = inlined_call_operand.hbm [shape: f32[64,128], index: 5, kind: output, shape index: {1}]
  %6 = xla_tuple %s4, %s5
  %s7 = sld [smem:[#allocation0]]
  $region50: #{_ssm_scan_call.1} parent=0
    _
  %s9 = ssub.s32 1, %s7
  %s10 = scalar_select 0, %s9, %s7
  $region1: #{_ssm_scan_call.1} parent=0
    #allocation2 [shape = 'u8[16384]{0}', space=vmem, size = 0x4000, scoped, tag = 'input window, operand 0, single buffered']
    #allocation3 [shape = 's32[1]{0}', space=sflag, size = 0x4, scoped, tag = 'scoped memory for _ssm_scan_call.1']
    #allocation4 [shape = 's32[1]{0}', space=sflag, size = 0x4, scoped, tag = 'scoped memory for _ssm_scan_call.1']
    #allocation5 [shape = 'u8[32768]{0}', space=vmem, size = 0x8000, scoped, tag = 'input window, operand 1, single buffered']
    #allocation6 [shape = 's32[1]{0}', space=sflag, size = 0x4, scoped, tag = 'scoped memory for _ssm_scan_call.1']
    #allocation7 [shape = 'u8[262144]{0}', space=vmem, size = 0x40000, scoped, tag = 'input window, operand 2, single buffered']
    #allocation8 [shape = 'u8[16384]{0}', space=vmem, size = 0x4000, scoped, tag = 'output window, operand 0, single buffered']
    #allocation9 [shape = 'u8[32768]{0}', space=vmem, size = 0x8000, scoped, tag = 'output window, operand 1, single buffered']
    #allocation10 [shape = 's32[1]{0}', space=sflag, size = 0x4, scoped, tag = 'scoped memory for _ssm_scan_call.1']
    %11 = vsyncpa [#allocation3], 0
    %12 = vsyncpa [#allocation6], 0
    %13 = vsyncpa [#allocation4], 0
    %14 = vsyncpa [#allocation10], 0
    // Predicated region
    $region2: #{_ssm_scan_call.1} parent=1 // pred_check
      _
    $region3: #{_ssm_scan_call.1} parent=1 // pred_check_branch
      %16 = sbr.rel (0) target = $region5
    $region4: #{_ssm_scan_call.1} parent=1 // pred_region
      %s18 = ssub.s32 512, 512
      %19 = vsyncadd [#allocation3], %s18
      %s20 = sshll.u32 [#allocation2], 4
      %s21 = int_to_ptr.vmem [resolvable:$true] %s20
      %26 = dma.hbm_to_vmem [thread:$0]  %s0, 512, %s21, [#allocation3], 64, 64, 4
    $region5: #{_ssm_scan_call.1} parent=1 // pred_fallthru
      _
    // Predicated region
    $region6: #{_ssm_scan_call.1} parent=1 // pred_check
      _
    $region7: #{_ssm_scan_call.1} parent=1 // pred_check_branch
      %28 = sbr.rel (0) target = $region9
    $region8: #{_ssm_scan_call.1} parent=1 // pred_region
      %s30 = ssub.s32 1024, 1024
      %31 = vsyncadd [#allocation6], %s30
      %s32 = sshll.u32 [#allocation5], 4
      %s33 = int_to_ptr.vmem [resolvable:$true] %s32
      %38 = dma.hbm_to_vmem [thread:$0]  %s1, 1024, %s33, [#allocation6], 128, 128, 8
    $region9: #{_ssm_scan_call.1} parent=1 // pred_fallthru
      _
    // Predicated region
    $region10: #{_ssm_scan_call.1} parent=1 // pred_check
      _
    $region11: #{_ssm_scan_call.1} parent=1 // pred_check_branch
      %40 = sbr.rel (0) target = $region13
    $region12: #{_ssm_scan_call.1} parent=1 // pred_region
      %s42 = ssub.s32 8192, 8192
      %43 = vsyncadd [#allocation6], %s42
      %s44 = sshll.u32 [#allocation7], 4
      %s45 = int_to_ptr.vmem [resolvable:$true] %s44
      %50 = dma.hbm_to_vmem [thread:$0]  %s2, 8192, %s45, [#allocation6], 512, 512, 32
    $region13: #{_ssm_scan_call.1} parent=1 // pred_fallthru
      _
    // Predicated region
    $region14: #{_ssm_scan_call.1} parent=1 // pred_check
      _
    $region15: #{_ssm_scan_call.1} parent=1 // pred_check_branch
      %52 = sbr.rel (0) target = $region17
    $region16: #{_ssm_scan_call.1} parent=1 // pred_region
      _
    $region17: #{_ssm_scan_call.1} parent=1 // pred_fallthru
      _
    // Predicated region
    $region18: #{_ssm_scan_call.1} parent=1 // pred_check
      _
    $region19: #{_ssm_scan_call.1} parent=1 // pred_check_branch
      %54 = sbr.rel (0) target = $region21
    $region20: #{_ssm_scan_call.1} parent=1 // pred_region
      %55 = dma.done [#allocation3], 512
    $region21: #{_ssm_scan_call.1} parent=1 // pred_fallthru
      _
    // Predicated region
    $region22: #{_ssm_scan_call.1} parent=1 // pred_check
      _
    $region23: #{_ssm_scan_call.1} parent=1 // pred_check_branch
      %57 = sbr.rel (0) target = $region25
    $region24: #{_ssm_scan_call.1} parent=1 // pred_region
      %58 = dma.done [#allocation6], 1024
    $region25: #{_ssm_scan_call.1} parent=1 // pred_fallthru
      _
    // Predicated region
    $region26: #{_ssm_scan_call.1} parent=1 // pred_check
      _
    $region27: #{_ssm_scan_call.1} parent=1 // pred_check_branch
      %60 = sbr.rel (0) target = $region29
    $region28: #{_ssm_scan_call.1} parent=1 // pred_region
      %61 = dma.done [#allocation6], 8192
    $region29: #{_ssm_scan_call.1} parent=1 // pred_fallthru
      _
    %p63 = scmp.eq.s32.totalorder 0, 0
    // Predicated region
    $region30: #{_ssm_scan_call.1} parent=1 // pred_check
      %p64 = pneg %p63
    $region31: #{_ssm_scan_call.1} parent=1 // pred_check_branch
      %66 = sbr.rel (%p64) target = $region33
    $region32: #{_ssm_scan_call.1} parent=1 // pred_region
      %v67 = vld [vmem:[#allocation2] sm:$0xf]
      %v68 = vld [vmem:[#allocation2 + $0x4] sm:$0xf]
      %v69 = vld [vmem:[#allocation2 + $0x8] sm:$0xf]
      %v70 = vld [vmem:[#allocation2 + $0xc] sm:$0xf]
      %v71 = vld [vmem:[#allocation2 + $0x10] sm:$0xf]
      %v72 = vld [vmem:[#allocation2 + $0x14] sm:$0xf]
      %v73 = vld [vmem:[#allocation2 + $0x18] sm:$0xf]
      %v74 = vld [vmem:[#allocation2 + $0x1c] sm:$0xf]
      %75 = vst [vmem:[#allocation8] sm:$0xf] %v67
      %76 = vst [vmem:[#allocation8 + $0x4] sm:$0xf] %v68
      %77 = vst [vmem:[#allocation8 + $0x8] sm:$0xf] %v69
      %78 = vst [vmem:[#allocation8 + $0xc] sm:$0xf] %v70
      %79 = vst [vmem:[#allocation8 + $0x10] sm:$0xf] %v71
      %80 = vst [vmem:[#allocation8 + $0x14] sm:$0xf] %v72
      %81 = vst [vmem:[#allocation8 + $0x18] sm:$0xf] %v73
      %82 = vst [vmem:[#allocation8 + $0x1c] sm:$0xf] %v74
    $region33: #{_ssm_scan_call.1} parent=1 // pred_fallthru
      _
    %v83 = vld [vmem:[#allocation5] sm:$0xff]
    %v84 = vld [vmem:[#allocation5 + $0x8] sm:$0xff]
    %v85 = vld [vmem:[#allocation5 + $0x10] sm:$0xff]
    %v86 = vld [vmem:[#allocation5 + $0x18] sm:$0xff]
    %v87 = vld [vmem:[#allocation5 + $0x20] sm:$0xff]
    %v88 = vld [vmem:[#allocation5 + $0x28] sm:$0xff]
    %v89 = vld [vmem:[#allocation5 + $0x30] sm:$0xff]
    %v90 = vld [vmem:[#allocation5 + $0x38] sm:$0xff]
    %v91 = vpack.c.bf16 %v84, %v83
    %v92 = vpack.c.bf16 %v86, %v85
    %v93 = vpack.c.bf16 %v88, %v87
    %v94 = vpack.c.bf16 %v90, %v89
    %v95 = vld [vmem:[#allocation8] sm:$0xf]
    %v96 = vld [vmem:[#allocation8 + $0x4] sm:$0xf]
    %v97 = vld [vmem:[#allocation8 + $0x8] sm:$0xf]
    %v98 = vld [vmem:[#allocation8 + $0xc] sm:$0xf]
    %v99 = vld [vmem:[#allocation8 + $0x10] sm:$0xf]
    %v100 = vld [vmem:[#allocation8 + $0x14] sm:$0xf]
    %v101 = vld [vmem:[#allocation8 + $0x18] sm:$0xf]
    %v102 = vld [vmem:[#allocation8 + $0x1c] sm:$0xf]
    %v111 = vunpack.c.l.b16 %v95
    %v112 = vunpack.c.l.b16 %v96
    %v113 = vunpack.c.l.b16 %v97
    %v114 = vunpack.c.l.b16 %v98
    %v115 = vunpack.c.l.b16 %v99
    %v116 = vunpack.c.l.b16 %v100
    %v117 = vunpack.c.l.b16 %v101
    %v118 = vunpack.c.l.b16 %v102
    %v119 = vpack.c.b16 %v112, %v111
    %v120 = vpack.c.b16 %v114, %v113
    %v121 = vpack.c.b16 %v116, %v115
    %v122 = vpack.c.b16 %v118, %v117
    %v127 = vld [vmem:[#allocation7] sm:$0xff]
    %v128 = vld [vmem:[#allocation7 + $0x8] sm:$0xff]
    %v129 = vld [vmem:[#allocation7 + $0x10] sm:$0xff]
    %v130 = vld [vmem:[#allocation7 + $0x18] sm:$0xff]
    %v131 = vld [vmem:[#allocation7 + $0x20] sm:$0xff]
    %v132 = vld [vmem:[#allocation7 + $0x28] sm:$0xff]
    %v133 = vld [vmem:[#allocation7 + $0x30] sm:$0xff]
    %v134 = vld [vmem:[#allocation7 + $0x38] sm:$0xff]
    %v135 = vld [vmem:[#allocation7 + $0x40] sm:$0xff]
    %v136 = vld [vmem:[#allocation7 + $0x48] sm:$0xff]
    %v137 = vld [vmem:[#allocation7 + $0x50] sm:$0xff]
    %v138 = vld [vmem:[#allocation7 + $0x58] sm:$0xff]
    %v139 = vld [vmem:[#allocation7 + $0x60] sm:$0xff]
    %v140 = vld [vmem:[#allocation7 + $0x68] sm:$0xff]
    %v141 = vld [vmem:[#allocation7 + $0x70] sm:$0xff]
    %v142 = vld [vmem:[#allocation7 + $0x78] sm:$0xff]
    %v143 = vld [vmem:[#allocation7 + $0x80] sm:$0xff]
    %v144 = vld [vmem:[#allocation7 + $0x88] sm:$0xff]
    %v145 = vld [vmem:[#allocation7 + $0x90] sm:$0xff]
    %v146 = vld [vmem:[#allocation7 + $0x98] sm:$0xff]
    %v147 = vld [vmem:[#allocation7 + $0xa0] sm:$0xff]
    %v148 = vld [vmem:[#allocation7 + $0xa8] sm:$0xff]
    %v149 = vld [vmem:[#allocation7 + $0xb0] sm:$0xff]
    %v150 = vld [vmem:[#allocation7 + $0xb8] sm:$0xff]
    %v151 = vld [vmem:[#allocation7 + $0xc0] sm:$0xff]
    %v152 = vld [vmem:[#allocation7 + $0xc8] sm:$0xff]
    %v153 = vld [vmem:[#allocation7 + $0xd0] sm:$0xff]
    %v154 = vld [vmem:[#allocation7 + $0xd8] sm:$0xff]
    %v155 = vld [vmem:[#allocation7 + $0xe0] sm:$0xff]
    %v156 = vld [vmem:[#allocation7 + $0xe8] sm:$0xff]
    %v157 = vld [vmem:[#allocation7 + $0xf0] sm:$0xff]
    %v158 = vld [vmem:[#allocation7 + $0xf8] sm:$0xff]
    %v159 = vld [vmem:[#allocation7 + $0x100] sm:$0xff]
    %v160 = vld [vmem:[#allocation7 + $0x108] sm:$0xff]
    %v161 = vld [vmem:[#allocation7 + $0x110] sm:$0xff]
    %v162 = vld [vmem:[#allocation7 + $0x118] sm:$0xff]
    %v163 = vld [vmem:[#allocation7 + $0x120] sm:$0xff]
    %v164 = vld [vmem:[#allocation7 + $0x128] sm:$0xff]
    %v165 = vld [vmem:[#allocation7 + $0x130] sm:$0xff]
    %v166 = vld [vmem:[#allocation7 + $0x138] sm:$0xff]
    %v167 = vld [vmem:[#allocation7 + $0x140] sm:$0xff]
    %v168 = vld [vmem:[#allocation7 + $0x148] sm:$0xff]
    %v169 = vld [vmem:[#allocation7 + $0x150] sm:$0xff]
    %v170 = vld [vmem:[#allocation7 + $0x158] sm:$0xff]
    %v171 = vld [vmem:[#allocation7 + $0x160] sm:$0xff]
    %v172 = vld [vmem:[#allocation7 + $0x168] sm:$0xff]
    %v173 = vld [vmem:[#allocation7 + $0x170] sm:$0xff]
    %v174 = vld [vmem:[#allocation7 + $0x178] sm:$0xff]
    %v175 = vld [vmem:[#allocation7 + $0x180] sm:$0xff]
    %v176 = vld [vmem:[#allocation7 + $0x188] sm:$0xff]
    %v177 = vld [vmem:[#allocation7 + $0x190] sm:$0xff]
    %v178 = vld [vmem:[#allocation7 + $0x198] sm:$0xff]
    %v179 = vld [vmem:[#allocation7 + $0x1a0] sm:$0xff]
    %v180 = vld [vmem:[#allocation7 + $0x1a8] sm:$0xff]
    %v181 = vld [vmem:[#allocation7 + $0x1b0] sm:$0xff]
    %v182 = vld [vmem:[#allocation7 + $0x1b8] sm:$0xff]
    %v183 = vld [vmem:[#allocation7 + $0x1c0] sm:$0xff]
    %v184 = vld [vmem:[#allocation7 + $0x1c8] sm:$0xff]
    %v185 = vld [vmem:[#allocation7 + $0x1d0] sm:$0xff]
    %v186 = vld [vmem:[#allocation7 + $0x1d8] sm:$0xff]
    %v187 = vld [vmem:[#allocation7 + $0x1e0] sm:$0xff]
    %v188 = vld [vmem:[#allocation7 + $0x1e8] sm:$0xff]
    %v189 = vld [vmem:[#allocation7 + $0x1f0] sm:$0xff]
    %v190 = vld [vmem:[#allocation7 + $0x1f8] sm:$0xff]
    %v255 = vunpack.c.l.b16 %v127
    %v256 = vunpack.c.h.b16 %v127
    %v257 = vunpack.c.l.b16 %v128
    %v258 = vunpack.c.h.b16 %v128
    %v259 = vunpack.c.l.b16 %v129
    %v260 = vunpack.c.h.b16 %v129
    %v261 = vunpack.c.l.b16 %v130
    %v262 = vunpack.c.h.b16 %v130
    %v263 = vunpack.c.l.b16 %v131
    %v264 = vunpack.c.h.b16 %v131
    %v265 = vunpack.c.l.b16 %v132
    %v266 = vunpack.c.h.b16 %v132
    %v267 = vunpack.c.l.b16 %v133
    %v268 = vunpack.c.h.b16 %v133
    %v269 = vunpack.c.l.b16 %v134
    %v270 = vunpack.c.h.b16 %v134
    %v271 = vunpack.c.l.b16 %v135
    %v272 = vunpack.c.h.b16 %v135
    %v273 = vunpack.c.l.b16 %v136
    %v274 = vunpack.c.h.b16 %v136
    %v275 = vunpack.c.l.b16 %v137
    %v276 = vunpack.c.h.b16 %v137
    %v277 = vunpack.c.l.b16 %v138
    %v278 = vunpack.c.h.b16 %v138
    %v279 = vunpack.c.l.b16 %v139
    %v280 = vunpack.c.h.b16 %v139
    %v281 = vunpack.c.l.b16 %v140
    %v282 = vunpack.c.h.b16 %v140
    %v283 = vunpack.c.l.b16 %v141
    %v284 = vunpack.c.h.b16 %v141
    %v285 = vunpack.c.l.b16 %v142
    %v286 = vunpack.c.h.b16 %v142
    %v287 = vunpack.c.l.b16 %v143
    %v288 = vunpack.c.h.b16 %v143
    %v289 = vunpack.c.l.b16 %v144
    %v290 = vunpack.c.h.b16 %v144
    %v291 = vunpack.c.l.b16 %v145
    %v292 = vunpack.c.h.b16 %v145
    %v293 = vunpack.c.l.b16 %v146
    %v294 = vunpack.c.h.b16 %v146
    %v295 = vunpack.c.l.b16 %v147
    %v296 = vunpack.c.h.b16 %v147
    %v297 = vunpack.c.l.b16 %v148
    %v298 = vunpack.c.h.b16 %v148
    %v299 = vunpack.c.l.b16 %v149
    %v300 = vunpack.c.h.b16 %v149
    %v301 = vunpack.c.l.b16 %v150
    %v302 = vunpack.c.h.b16 %v150
    %v303 = vunpack.c.l.b16 %v151
    %v304 = vunpack.c.h.b16 %v151
    %v305 = vunpack.c.l.b16 %v152
    %v306 = vunpack.c.h.b16 %v152
    %v307 = vunpack.c.l.b16 %v153
    %v308 = vunpack.c.h.b16 %v153
    %v309 = vunpack.c.l.b16 %v154
    %v310 = vunpack.c.h.b16 %v154
    %v311 = vunpack.c.l.b16 %v155
    %v312 = vunpack.c.h.b16 %v155
    %v313 = vunpack.c.l.b16 %v156
    %v314 = vunpack.c.h.b16 %v156
    %v315 = vunpack.c.l.b16 %v157
    %v316 = vunpack.c.h.b16 %v157
    %v317 = vunpack.c.l.b16 %v158
    %v318 = vunpack.c.h.b16 %v158
    %v319 = vunpack.c.l.b16 %v159
    %v320 = vunpack.c.h.b16 %v159
    %v321 = vunpack.c.l.b16 %v160
    %v322 = vunpack.c.h.b16 %v160
    %v323 = vunpack.c.l.b16 %v161
    %v324 = vunpack.c.h.b16 %v161
    %v325 = vunpack.c.l.b16 %v162
    %v326 = vunpack.c.h.b16 %v162
    %v327 = vunpack.c.l.b16 %v163
    %v328 = vunpack.c.h.b16 %v163
    %v329 = vunpack.c.l.b16 %v164
    %v330 = vunpack.c.h.b16 %v164
    %v331 = vunpack.c.l.b16 %v165
    %v332 = vunpack.c.h.b16 %v165
    %v333 = vunpack.c.l.b16 %v166
    %v334 = vunpack.c.h.b16 %v166
    %v335 = vunpack.c.l.b16 %v167
    %v336 = vunpack.c.h.b16 %v167
    %v337 = vunpack.c.l.b16 %v168
    %v338 = vunpack.c.h.b16 %v168
    %v339 = vunpack.c.l.b16 %v169
    %v340 = vunpack.c.h.b16 %v169
    %v341 = vunpack.c.l.b16 %v170
    %v342 = vunpack.c.h.b16 %v170
    %v343 = vunpack.c.l.b16 %v171
    %v344 = vunpack.c.h.b16 %v171
    %v345 = vunpack.c.l.b16 %v172
    %v346 = vunpack.c.h.b16 %v172
    %v347 = vunpack.c.l.b16 %v173
    %v348 = vunpack.c.h.b16 %v173
    %v349 = vunpack.c.l.b16 %v174
    %v350 = vunpack.c.h.b16 %v174
    %v351 = vunpack.c.l.b16 %v175
    %v352 = vunpack.c.h.b16 %v175
    %v353 = vunpack.c.l.b16 %v176
    %v354 = vunpack.c.h.b16 %v176
    %v355 = vunpack.c.l.b16 %v177
    %v356 = vunpack.c.h.b16 %v177
    %v357 = vunpack.c.l.b16 %v178
    %v358 = vunpack.c.h.b16 %v178
    %v359 = vunpack.c.l.b16 %v179
    %v360 = vunpack.c.h.b16 %v179
    %v361 = vunpack.c.l.b16 %v180
    %v362 = vunpack.c.h.b16 %v180
    %v363 = vunpack.c.l.b16 %v181
    %v364 = vunpack.c.h.b16 %v181
    %v365 = vunpack.c.l.b16 %v182
    %v366 = vunpack.c.h.b16 %v182
    %v367 = vunpack.c.l.b16 %v183
    %v368 = vunpack.c.h.b16 %v183
    %v369 = vunpack.c.l.b16 %v184
    %v370 = vunpack.c.h.b16 %v184
    %v371 = vunpack.c.l.b16 %v185
    %v372 = vunpack.c.h.b16 %v185
    %v373 = vunpack.c.l.b16 %v186
    %v374 = vunpack.c.h.b16 %v186
    %v375 = vunpack.c.l.b16 %v187
    %v376 = vunpack.c.h.b16 %v187
    %v377 = vunpack.c.l.b16 %v188
    %v378 = vunpack.c.h.b16 %v188
    %v379 = vunpack.c.l.b16 %v189
    %v380 = vunpack.c.h.b16 %v189
    %v381 = vunpack.c.l.b16 %v190
    %v382 = vunpack.c.h.b16 %v190
    %v383 = vpack.c.b16 %v263, %v255
    %v384 = vpack.c.b16 %v264, %v256
    %v385 = vpack.c.b16 %v265, %v257
    %v386 = vpack.c.b16 %v266, %v258
    %v387 = vpack.c.b16 %v267, %v259
    %v388 = vpack.c.b16 %v268, %v260
    %v389 = vpack.c.b16 %v269, %v261
    %v390 = vpack.c.b16 %v270, %v262
    %v391 = vpack.c.b16 %v279, %v271
    %v392 = vpack.c.b16 %v280, %v272
    %v393 = vpack.c.b16 %v281, %v273
    %v394 = vpack.c.b16 %v282, %v274
    %v395 = vpack.c.b16 %v283, %v275
    %v396 = vpack.c.b16 %v284, %v276
    %v397 = vpack.c.b16 %v285, %v277
    %v398 = vpack.c.b16 %v286, %v278
    %v399 = vpack.c.b16 %v295, %v287
    %v400 = vpack.c.b16 %v296, %v288
    %v401 = vpack.c.b16 %v297, %v289
    %v402 = vpack.c.b16 %v298, %v290
    %v403 = vpack.c.b16 %v299, %v291
    %v404 = vpack.c.b16 %v300, %v292
    %v405 = vpack.c.b16 %v301, %v293
    %v406 = vpack.c.b16 %v302, %v294
    %v407 = vpack.c.b16 %v311, %v303
    %v408 = vpack.c.b16 %v312, %v304
    %v409 = vpack.c.b16 %v313, %v305
    %v410 = vpack.c.b16 %v314, %v306
    %v411 = vpack.c.b16 %v315, %v307
    %v412 = vpack.c.b16 %v316, %v308
    %v413 = vpack.c.b16 %v317, %v309
    %v414 = vpack.c.b16 %v318, %v310
    %v415 = vpack.c.b16 %v327, %v319
    %v416 = vpack.c.b16 %v328, %v320
    %v417 = vpack.c.b16 %v329, %v321
    %v418 = vpack.c.b16 %v330, %v322
    %v419 = vpack.c.b16 %v331, %v323
    %v420 = vpack.c.b16 %v332, %v324
    %v421 = vpack.c.b16 %v333, %v325
    %v422 = vpack.c.b16 %v334, %v326
    %v423 = vpack.c.b16 %v343, %v335
    %v424 = vpack.c.b16 %v344, %v336
    %v425 = vpack.c.b16 %v345, %v337
    %v426 = vpack.c.b16 %v346, %v338
    %v427 = vpack.c.b16 %v347, %v339
    %v428 = vpack.c.b16 %v348, %v340
    %v429 = vpack.c.b16 %v349, %v341
    %v430 = vpack.c.b16 %v350, %v342
    %v431 = vpack.c.b16 %v359, %v351
    %v432 = vpack.c.b16 %v360, %v352
    %v433 = vpack.c.b16 %v361, %v353
    %v434 = vpack.c.b16 %v362, %v354
    %v435 = vpack.c.b16 %v363, %v355
    %v436 = vpack.c.b16 %v364, %v356
    %v437 = vpack.c.b16 %v365, %v357
    %v438 = vpack.c.b16 %v366, %v358
    %v439 = vpack.c.b16 %v375, %v367
    %v440 = vpack.c.b16 %v376, %v368
    %v441 = vpack.c.b16 %v377, %v369
    %v442 = vpack.c.b16 %v378, %v370
    %v443 = vpack.c.b16 %v379, %v371
    %v444 = vpack.c.b16 %v380, %v372
    %v445 = vpack.c.b16 %v381, %v373
    %v446 = vpack.c.b16 %v382, %v374
    %511 = vmatprep.subr.bf16.mxu0 %v384
    %512 = vmatpush1.bf16.msra.mxu0 %v383
    %513 = vmatprep.subr.bf16.mxu0 %v392
    %514 = vmatpush1.bf16.msra.mxu0 %v391
    %515 = vmatprep.subr.bf16.mxu0 %v400
    %516 = vmatpush1.bf16.msra.mxu0 %v399
    %517 = vmatprep.subr.bf16.mxu0 %v408
    %518 = vmatpush1.bf16.msra.mxu0 %v407
    %519 = vmatprep.subr.bf16.mxu0 %v416
    %520 = vmatpush1.bf16.msra.mxu0 %v415
    %521 = vmatprep.subr.bf16.mxu0 %v424
    %522 = vmatpush1.bf16.msra.mxu0 %v423
    %523 = vmatprep.subr.bf16.mxu0 %v432
    %524 = vmatpush1.bf16.msra.mxu0 %v431
    %525 = vmatprep.subr.bf16.mxu0 %v440
    %526 = vmatpush1.bf16.msra.mxu0 %v439
    %527 = vmatprep.subr.bf16.mxu0 0
    %528 = vmatpush1.bf16.msra.mxu0 0
    %529 = vmatprep.subr.bf16.mxu0 0
    %530 = vmatpush1.bf16.msra.mxu0 0
    %531 = vmatprep.subr.bf16.mxu0 0
    %532 = vmatpush1.bf16.msra.mxu0 0
    %533 = vmatprep.subr.bf16.mxu0 0
    %534 = vmatpush1.bf16.msra.mxu0 0
    %535 = vmatprep.subr.bf16.mxu0 0
    %536 = vmatpush1.bf16.msra.mxu0 0
    %537 = vmatprep.subr.bf16.mxu0 0
    %538 = vmatpush1.bf16.msra.mxu0 0
    %539 = vmatprep.subr.bf16.mxu0 0
    %540 = vmatpush1.bf16.msra.mxu0 0
    %541 = vmatprep.subr.bf16.mxu0 0
    %542 = vmatpush1.bf16.msra.mxu0 0
    %543 = vmatprep.mubr.bf16.mxu0 0
    %544 = vmatmul.mubr.bf16.gmra.mrb[0].mxu0 %v119
    %v545 = vpop.f32.mrb[0].mxu0
    %v546 = vpop.f32.mrb[0].mxu0
    %v547 = vpop.f32.mrb[0].mxu0
    %v548 = vadd.f32 0.0, %v547
    %v549 = vpop.f32.mrb[0].mxu0
    %550 = vmatprep.mubr.bf16.mxu0 0
    %551 = vmatmul.mubr.bf16.gmra.mrb[0].mxu0 %v120
    %v552 = vpop.f32.mrb[0].mxu0
    %v553 = vadd.f32 0.0, %v552
    %v554 = vpop.f32.mrb[0].mxu0
    %v555 = vadd.f32 0.0, %v554
    %v556 = vpop.f32.mrb[0].mxu0
    %v557 = vadd.f32 0.0, %v556
    %v558 = vpop.f32.mrb[0].mxu0
    %v559 = vadd.f32 0.0, %v558
    %560 = vmatprep.mubr.bf16.mxu0 0
    %561 = vmatmul.mubr.bf16.gmra.mrb[0].mxu0 %v121
    %v562 = vpop.f32.mrb[0].mxu0
    %v563 = vadd.f32 0.0, %v562
    %v564 = vpop.f32.mrb[0].mxu0
    %v565 = vadd.f32 0.0, %v564
    %v566 = vpop.f32.mrb[0].mxu0
    %v567 = vadd.f32 0.0, %v566
    %v568 = vpop.f32.mrb[0].mxu0
    %v569 = vadd.f32 0.0, %v568
    %570 = vmatprep.mubr.bf16.mxu0 0
    %571 = vmatmul.mubr.bf16.gmra.mrb[0].mxu0 %v122
    %v572 = vpop.f32.mrb[0].mxu0
    %v573 = vadd.f32 0.0, %v572
    %v574 = vpop.f32.mrb[0].mxu0
    %v575 = vadd.f32 0.0, %v574
    %v576 = vpop.f32.mrb[0].mxu0
    %v577 = vadd.f32 0.0, %v576
    %v578 = vpop.f32.mrb[0].mxu0
    %v579 = vadd.f32 0.0, %v578
    %580 = vmatprep.mubr.bf16.mxu0 0
    %581 = vmatmul.mubr.bf16.gmra.mrb[0].mxu0 %v91
    %v582 = vpop.f32.mrb[0].mxu0
    %v583 = vadd.f32 0.0, %v582
    %v584 = vpop.f32.mrb[0].mxu0
    %v585 = vadd.f32 0.0, %v584
    %v586 = vpop.f32.mrb[0].mxu0
    %v587 = vpop.f32.mrb[0].mxu0
    %v588 = vadd.f32 0.0, %v587
    %589 = vmatprep.mubr.bf16.mxu0 0
    %590 = vmatmul.mubr.bf16.gmra.mrb[0].mxu0 %v92
    %v591 = vpop.f32.mrb[0].mxu0
    %v592 = vpop.f32.mrb[0].mxu0
    %v593 = vpop.f32.mrb[0].mxu0
    %v594 = vpop.f32.mrb[0].mxu0
    %595 = vmatprep.mubr.bf16.mxu0 0
    %596 = vmatmul.mubr.bf16.gmra.mrb[0].mxu0 %v93
    %v597 = vpop.f32.mrb[0].mxu0
    %v598 = vpop.f32.mrb[0].mxu0
    %v599 = vpop.f32.mrb[0].mxu0
    %v600 = vpop.f32.mrb[0].mxu0
    %601 = vmatprep.mubr.bf16.mxu0 0
    %602 = vmatmul.mubr.bf16.gmra.mrb[0].mxu0 %v94
    %v603 = vpop.f32.mrb[0].mxu0
    %v604 = vpop.f32.mrb[0].mxu0
    %v605 = vpop.f32.mrb[0].mxu0
    %v606 = vpop.f32.mrb[0].mxu0
    %607 = vdwg.mxu0
    %608 = vmatprep.subr.bf16.mxu0 %v386
    %609 = vmatpush1.bf16.msra.mxu0 %v385
    %610 = vmatprep.subr.bf16.mxu0 %v394
    %611 = vmatpush1.bf16.msra.mxu0 %v393
    %612 = vmatprep.subr.bf16.mxu0 %v402
    %613 = vmatpush1.bf16.msra.mxu0 %v401
    %614 = vmatprep.subr.bf16.mxu0 %v410
    %615 = vmatpush1.bf16.msra.mxu0 %v409
    %616 = vmatprep.subr.bf16.mxu0 %v418
    %617 = vmatpush1.bf16.msra.mxu0 %v417
    %618 = vmatprep.subr.bf16.mxu0 %v426
    %619 = vmatpush1.bf16.msra.mxu0 %v425
    %620 = vmatprep.subr.bf16.mxu0 %v434
    %621 = vmatpush1.bf16.msra.mxu0 %v433
    %622 = vmatprep.subr.bf16.mxu0 %v442
    %623 = vmatpush1.bf16.msra.mxu0 %v441
    %624 = vmatprep.subr.bf16.mxu0 0
    %625 = vmatpush1.bf16.msra.mxu0 0
    %626 = vmatprep.subr.bf16.mxu0 0
    %627 = vmatpush1.bf16.msra.mxu0 0
    %628 = vmatprep.subr.bf16.mxu0 0
    %629 = vmatpush1.bf16.msra.mxu0 0
    %630 = vmatprep.subr.bf16.mxu0 0
    %631 = vmatpush1.bf16.msra.mxu0 0
    %632 = vmatprep.subr.bf16.mxu0 0
    %633 = vmatpush1.bf16.msra.mxu0 0
    %634 = vmatprep.subr.bf16.mxu0 0
    %635 = vmatpush1.bf16.msra.mxu0 0
    %636 = vmatprep.subr.bf16.mxu0 0
    %637 = vmatpush1.bf16.msra.mxu0 0
    %638 = vmatprep.subr.bf16.mxu0 0
    %639 = vmatpush1.bf16.msra.mxu0 0
    %640 = vmatprep.mubr.bf16.mxu0 0
    %641 = vmatmul.mubr.bf16.gmra.mrb[0].mxu0 %v119
    %v642 = vpop.f32.mrb[0].mxu0
    %v643 = vpop.f32.mrb[0].mxu0
    %v644 = vpop.f32.mrb[0].mxu0
    %v645 = vpop.f32.mrb[0].mxu0
    %646 = vmatprep.mubr.bf16.mxu0 0
    %647 = vmatmul.mubr.bf16.gmra.mrb[0].mxu0 %v120
    %v648 = vpop.f32.mrb[0].mxu0
    %v649 = vpop.f32.mrb[0].mxu0
    %v650 = vpop.f32.mrb[0].mxu0
    %v651 = vadd.f32 0.0, %v650
    %v652 = vpop.f32.mrb[0].mxu0
    %653 = vmatprep.mubr.bf16.mxu0 0
    %654 = vmatmul.mubr.bf16.gmra.mrb[0].mxu0 %v121
    %v655 = vpop.f32.mrb[0].mxu0
    %v656 = vadd.f32 0.0, %v655
    %v657 = vpop.f32.mrb[0].mxu0
    %v658 = vadd.f32 0.0, %v657
    %v659 = vpop.f32.mrb[0].mxu0
    %v660 = vadd.f32 0.0, %v659
    %v661 = vpop.f32.mrb[0].mxu0
    %v662 = vadd.f32 0.0, %v661
    %663 = vmatprep.mubr.bf16.mxu0 0
    %664 = vmatmul.mubr.bf16.gmra.mrb[0].mxu0 %v122
    %v665 = vpop.f32.mrb[0].mxu0
    %v666 = vadd.f32 0.0, %v665
    %v667 = vpop.f32.mrb[0].mxu0
    %v668 = vadd.f32 0.0, %v667
    %v669 = vpop.f32.mrb[0].mxu0
    %v670 = vadd.f32 0.0, %v669
    %v671 = vpop.f32.mrb[0].mxu0
    %v672 = vadd.f32 0.0, %v671
    %673 = vmatprep.mubr.bf16.mxu0 0
    %674 = vmatmul.mubr.bf16.gmra.mrb[0].mxu0 %v91
    %v675 = vpop.f32.mrb[0].mxu0
    %v676 = vadd.f32 0.0, %v675
    %v677 = vpop.f32.mrb[0].mxu0
    %v678 = vadd.f32 0.0, %v677
    %v679 = vpop.f32.mrb[0].mxu0
    %v680 = vadd.f32 0.0, %v679
    %v681 = vpop.f32.mrb[0].mxu0
    %v682 = vadd.f32 0.0, %v681
    %683 = vmatprep.mubr.bf16.mxu0 0
    %684 = vmatmul.mubr.bf16.gmra.mrb[0].mxu0 %v92
    %v685 = vpop.f32.mrb[0].mxu0
    %v686 = vadd.f32 0.0, %v685
    %v687 = vpop.f32.mrb[0].mxu0
    %v688 = vadd.f32 0.0, %v687
    %v689 = vpop.f32.mrb[0].mxu0
    %v690 = vpop.f32.mrb[0].mxu0
    %v691 = vadd.f32 0.0, %v690
    %692 = vmatprep.mubr.bf16.mxu0 0
    %693 = vmatmul.mubr.bf16.gmra.mrb[0].mxu0 %v93
    %v694 = vpop.f32.mrb[0].mxu0
    %v695 = vpop.f32.mrb[0].mxu0
    %v696 = vpop.f32.mrb[0].mxu0
    %v697 = vpop.f32.mrb[0].mxu0
    %698 = vmatprep.mubr.bf16.mxu0 0
    %699 = vmatmul.mubr.bf16.gmra.mrb[0].mxu0 %v94
    %v700 = vpop.f32.mrb[0].mxu0
    %v701 = vpop.f32.mrb[0].mxu0
    %v702 = vpop.f32.mrb[0].mxu0
    %v703 = vpop.f32.mrb[0].mxu0
    %704 = vdwg.mxu0
    %705 = vmatprep.subr.bf16.mxu0 %v388
    %706 = vmatpush1.bf16.msra.mxu0 %v387
    %707 = vmatprep.subr.bf16.mxu0 %v396
    %708 = vmatpush1.bf16.msra.mxu0 %v395
    %709 = vmatprep.subr.bf16.mxu0 %v404
    %710 = vmatpush1.bf16.msra.mxu0 %v403
    %711 = vmatprep.subr.bf16.mxu0 %v412
    %712 = vmatpush1.bf16.msra.mxu0 %v411
    %713 = vmatprep.subr.bf16.mxu0 %v420
    %714 = vmatpush1.bf16.msra.mxu0 %v419
    %715 = vmatprep.subr.bf16.mxu0 %v428
    %716 = vmatpush1.bf16.msra.mxu0 %v427
    %717 = vmatprep.subr.bf16.mxu0 %v436
    %718 = vmatpush1.bf16.msra.mxu0 %v435
    %719 = vmatprep.subr.bf16.mxu0 %v444
    %720 = vmatpush1.bf16.msra.mxu0 %v443
    %721 = vmatprep.subr.bf16.mxu0 0
    %722 = vmatpush1.bf16.msra.mxu0 0
    %723 = vmatprep.subr.bf16.mxu0 0
    %724 = vmatpush1.bf16.msra.mxu0 0
    %725 = vmatprep.subr.bf16.mxu0 0
    %726 = vmatpush1.bf16.msra.mxu0 0
    %727 = vmatprep.subr.bf16.mxu0 0
    %728 = vmatpush1.bf16.msra.mxu0 0
    %729 = vmatprep.subr.bf16.mxu0 0
    %730 = vmatpush1.bf16.msra.mxu0 0
    %731 = vmatprep.subr.bf16.mxu0 0
    %732 = vmatpush1.bf16.msra.mxu0 0
    %733 = vmatprep.subr.bf16.mxu0 0
    %734 = vmatpush1.bf16.msra.mxu0 0
    %735 = vmatprep.subr.bf16.mxu0 0
    %736 = vmatpush1.bf16.msra.mxu0 0
    %737 = vmatprep.mubr.bf16.mxu0 0
    %738 = vmatmul.mubr.bf16.gmra.mrb[0].mxu0 %v119
    %v739 = vpop.f32.mrb[0].mxu0
    %v740 = vpop.f32.mrb[0].mxu0
    %v741 = vpop.f32.mrb[0].mxu0
    %v742 = vpop.f32.mrb[0].mxu0
    %743 = vmatprep.mubr.bf16.mxu0 0
    %744 = vmatmul.mubr.bf16.gmra.mrb[0].mxu0 %v120
    %v745 = vpop.f32.mrb[0].mxu0
    %v746 = vpop.f32.mrb[0].mxu0
    %v747 = vpop.f32.mrb[0].mxu0
    %v748 = vpop.f32.mrb[0].mxu0
    %749 = vmatprep.mubr.bf16.mxu0 0
    %750 = vmatmul.mubr.bf16.gmra.mrb[0].mxu0 %v121
    %v751 = vpop.f32.mrb[0].mxu0
    %v752 = vpop.f32.mrb[0].mxu0
    %v753 = vpop.f32.mrb[0].mxu0
    %v754 = vadd.f32 0.0, %v753
    %v755 = vpop.f32.mrb[0].mxu0
    %756 = vmatprep.mubr.bf16.mxu0 0
    %757 = vmatmul.mubr.bf16.gmra.mrb[0].mxu0 %v122
    %v758 = vpop.f32.mrb[0].mxu0
    %v759 = vadd.f32 0.0, %v758
    %v760 = vpop.f32.mrb[0].mxu0
    %v761 = vadd.f32 0.0, %v760
    %v762 = vpop.f32.mrb[0].mxu0
    %v763 = vadd.f32 0.0, %v762
    %v764 = vpop.f32.mrb[0].mxu0
    %v765 = vadd.f32 0.0, %v764
    %766 = vmatprep.mubr.bf16.mxu0 0
    %767 = vmatmul.mubr.bf16.gmra.mrb[0].mxu0 %v91
    %v768 = vpop.f32.mrb[0].mxu0
    %v769 = vadd.f32 0.0, %v768
    %v770 = vpop.f32.mrb[0].mxu0
    %v771 = vadd.f32 0.0, %v770
    %v772 = vpop.f32.mrb[0].mxu0
    %v773 = vadd.f32 0.0, %v772
    %v774 = vpop.f32.mrb[0].mxu0
    %v775 = vadd.f32 0.0, %v774
    %776 = vmatprep.mubr.bf16.mxu0 0
    %777 = vmatmul.mubr.bf16.gmra.mrb[0].mxu0 %v92
    %v778 = vpop.f32.mrb[0].mxu0
    %v779 = vadd.f32 0.0, %v778
    %v780 = vpop.f32.mrb[0].mxu0
    %v781 = vadd.f32 0.0, %v780
    %v782 = vpop.f32.mrb[0].mxu0
    %v783 = vadd.f32 0.0, %v782
    %v784 = vpop.f32.mrb[0].mxu0
    %v785 = vadd.f32 0.0, %v784
    %786 = vmatprep.mubr.bf16.mxu0 0
    %787 = vmatmul.mubr.bf16.gmra.mrb[0].mxu0 %v93
    %v788 = vpop.f32.mrb[0].mxu0
    %v789 = vadd.f32 0.0, %v788
    %v790 = vpop.f32.mrb[0].mxu0
    %v791 = vadd.f32 0.0, %v790
    %v792 = vpop.f32.mrb[0].mxu0
    %v793 = vpop.f32.mrb[0].mxu0
    %v794 = vadd.f32 0.0, %v793
    %795 = vmatprep.mubr.bf16.mxu0 0
    %796 = vmatmul.mubr.bf16.gmra.mrb[0].mxu0 %v94
    %v797 = vpop.f32.mrb[0].mxu0
    %v798 = vpop.f32.mrb[0].mxu0
    %v799 = vpop.f32.mrb[0].mxu0
    %v800 = vpop.f32.mrb[0].mxu0
    %801 = vdwg.mxu0
    %802 = vmatprep.subr.bf16.mxu0 %v390
    %803 = vmatpush1.bf16.msra.mxu0 %v389
    %804 = vmatprep.subr.bf16.mxu0 %v398
    %805 = vmatpush1.bf16.msra.mxu0 %v397
    %806 = vmatprep.subr.bf16.mxu0 %v406
    %807 = vmatpush1.bf16.msra.mxu0 %v405
    %808 = vmatprep.subr.bf16.mxu0 %v414
    %809 = vmatpush1.bf16.msra.mxu0 %v413
    %810 = vmatprep.subr.bf16.mxu0 %v422
    %811 = vmatpush1.bf16.msra.mxu0 %v421
    %812 = vmatprep.subr.bf16.mxu0 %v430
    %813 = vmatpush1.bf16.msra.mxu0 %v429
    %814 = vmatprep.subr.bf16.mxu0 %v438
    %815 = vmatpush1.bf16.msra.mxu0 %v437
    %816 = vmatprep.subr.bf16.mxu0 %v446
    %817 = vmatpush1.bf16.msra.mxu0 %v445
    %818 = vmatprep.subr.bf16.mxu0 0
    %819 = vmatpush1.bf16.msra.mxu0 0
    %820 = vmatprep.subr.bf16.mxu0 0
    %821 = vmatpush1.bf16.msra.mxu0 0
    %822 = vmatprep.subr.bf16.mxu0 0
    %823 = vmatpush1.bf16.msra.mxu0 0
    %824 = vmatprep.subr.bf16.mxu0 0
    %825 = vmatpush1.bf16.msra.mxu0 0
    %826 = vmatprep.subr.bf16.mxu0 0
    %827 = vmatpush1.bf16.msra.mxu0 0
    %828 = vmatprep.subr.bf16.mxu0 0
    %829 = vmatpush1.bf16.msra.mxu0 0
    %830 = vmatprep.subr.bf16.mxu0 0
    %831 = vmatpush1.bf16.msra.mxu0 0
    %832 = vmatprep.subr.bf16.mxu0 0
    %833 = vmatpush1.bf16.msra.mxu0 0
    %834 = vmatprep.mubr.bf16.mxu0 0
    %835 = vmatmul.mubr.bf16.gmra.mrb[0].mxu0 %v119
    %v836 = vpop.f32.mrb[0].mxu0
    %v837 = vpop.f32.mrb[0].mxu0
    %v838 = vpop.f32.mrb[0].mxu0
    %v839 = vpop.f32.mrb[0].mxu0
    %840 = vmatprep.mubr.bf16.mxu0 0
    %841 = vmatmul.mubr.bf16.gmra.mrb[0].mxu0 %v120
    %v842 = vpop.f32.mrb[0].mxu0
    %v843 = vpop.f32.mrb[0].mxu0
    %v844 = vpop.f32.mrb[0].mxu0
    %v845 = vpop.f32.mrb[0].mxu0
    %846 = vmatprep.mubr.bf16.mxu0 0
    %847 = vmatmul.mubr.bf16.gmra.mrb[0].mxu0 %v121
    %v848 = vpop.f32.mrb[0].mxu0
    %v849 = vpop.f32.mrb[0].mxu0
    %v850 = vpop.f32.mrb[0].mxu0
    %v851 = vpop.f32.mrb[0].mxu0
    %852 = vmatprep.mubr.bf16.mxu0 0
    %853 = vmatmul.mubr.bf16.gmra.mrb[0].mxu0 %v122
    %v854 = vpop.f32.mrb[0].mxu0
    %v855 = vpop.f32.mrb[0].mxu0
    %v856 = vpop.f32.mrb[0].mxu0
    %v857 = vadd.f32 0.0, %v856
    %v858 = vpop.f32.mrb[0].mxu0
    %859 = vmatprep.mubr.bf16.mxu0 0
    %860 = vmatmul.mubr.bf16.gmra.mrb[0].mxu0 %v91
    %v861 = vpop.f32.mrb[0].mxu0
    %v862 = vadd.f32 0.0, %v861
    %v863 = vpop.f32.mrb[0].mxu0
    %v864 = vadd.f32 0.0, %v863
    %v865 = vpop.f32.mrb[0].mxu0
    %v866 = vadd.f32 0.0, %v865
    %v867 = vpop.f32.mrb[0].mxu0
    %v868 = vadd.f32 0.0, %v867
    %869 = vmatprep.mubr.bf16.mxu0 0
    %870 = vmatmul.mubr.bf16.gmra.mrb[0].mxu0 %v92
    %v871 = vpop.f32.mrb[0].mxu0
    %v872 = vadd.f32 0.0, %v871
    %v873 = vpop.f32.mrb[0].mxu0
    %v874 = vadd.f32 0.0, %v873
    %v875 = vpop.f32.mrb[0].mxu0
    %v876 = vadd.f32 0.0, %v875
    %v877 = vpop.f32.mrb[0].mxu0
    %v878 = vadd.f32 0.0, %v877
    %879 = vmatprep.mubr.bf16.mxu0 0
    %880 = vmatmul.mubr.bf16.gmra.mrb[0].mxu0 %v93
    %v881 = vpop.f32.mrb[0].mxu0
    %v882 = vadd.f32 0.0, %v881
    %v883 = vpop.f32.mrb[0].mxu0
    %v884 = vadd.f32 0.0, %v883
    %v885 = vpop.f32.mrb[0].mxu0
    %v886 = vadd.f32 0.0, %v885
    %v887 = vpop.f32.mrb[0].mxu0
    %v888 = vadd.f32 0.0, %v887
    %889 = vmatprep.mubr.bf16.mxu0 0
    %890 = vmatmul.mubr.bf16.gmra.mrb[0].mxu0 %v94
    %v891 = vpop.f32.mrb[0].mxu0
    %v892 = vadd.f32 0.0, %v891
    %v893 = vpop.f32.mrb[0].mxu0
    %v894 = vadd.f32 0.0, %v893
    %v895 = vpop.f32.mrb[0].mxu0
    %v896 = vpop.f32.mrb[0].mxu0
    %v897 = vadd.f32 0.0, %v896
    %898 = vdwg.mxu0
    %v899 = vadd.f32 %v548, %v555
    %v900 = vadd.f32 %v553, %v559
    %v901 = vadd.f32 %v557, %v565
    %v902 = vadd.f32 %v563, %v569
    %v903 = vadd.f32 %v567, %v575
    %v904 = vadd.f32 %v573, %v579
    %v905 = vadd.f32 %v577, %v585
    %v906 = vadd.f32 %v583, %v588
    %v907 = vadd.f32 %v899, %v651
    %v908 = vadd.f32 %v900, %v656
    %v909 = vadd.f32 %v901, %v660
    %v910 = vadd.f32 %v902, %v666
    %v911 = vadd.f32 %v903, %v670
    %v912 = vadd.f32 %v904, %v676
    %v913 = vadd.f32 %v905, %v680
    %v914 = vadd.f32 %v906, %v686
    %v915 = vadd.f32 %v907, %v658
    %v916 = vadd.f32 %v908, %v662
    %v917 = vadd.f32 %v909, %v668
    %v918 = vadd.f32 %v910, %v672
    %v919 = vadd.f32 %v911, %v678
    %v920 = vadd.f32 %v912, %v682
    %v921 = vadd.f32 %v913, %v688
    %v922 = vadd.f32 %v914, %v691
    %v923 = vadd.f32 %v915, %v754
    %v924 = vadd.f32 %v916, %v759
    %v925 = vadd.f32 %v917, %v763
    %v926 = vadd.f32 %v918, %v769
    %v927 = vadd.f32 %v919, %v773
    %v928 = vadd.f32 %v920, %v779
    %v929 = vadd.f32 %v921, %v783
    %v930 = vadd.f32 %v922, %v789
    %v931 = vadd.f32 %v923, %v761
    %v932 = vadd.f32 %v924, %v765
    %v933 = vadd.f32 %v925, %v771
    %v934 = vadd.f32 %v926, %v775
    %v935 = vadd.f32 %v927, %v781
    %v936 = vadd.f32 %v928, %v785
    %v937 = vadd.f32 %v929, %v791
    %v938 = vadd.f32 %v930, %v794
    %v939 = vadd.f32 %v931, %v857
    %v940 = vadd.f32 %v932, %v862
    %v941 = vadd.f32 %v933, %v866
    %v942 = vadd.f32 %v934, %v872
    %v943 = vadd.f32 %v935, %v876
    %v944 = vadd.f32 %v936, %v882
    %v945 = vadd.f32 %v937, %v886
    %v946 = vadd.f32 %v938, %v892
    %v947 = vadd.f32 %v939, %v864
    %v948 = vadd.f32 %v940, %v868
    %v949 = vadd.f32 %v941, %v874
    %v950 = vadd.f32 %v942, %v878
    %v951 = vadd.f32 %v943, %v884
    %v952 = vadd.f32 %v944, %v888
    %v953 = vadd.f32 %v945, %v894
    %v954 = vadd.f32 %v946, %v897
    %v955 = vld [vmem:[%s3] sm:$0x1]
    %v957 = vlaneseq
    %v958 = vshrl.u32 %v957, 7
    %v959 = vsub.s32 0, %v958
    %v960 = vrot.slane %v955, %v959
    %v962 = vadd.f32 %v947, %v960
    %v963 = vadd.f32 %v948, %v960
    %v964 = vadd.f32 %v949, %v960
    %v965 = vadd.f32 %v950, %v960
    %v966 = vadd.f32 %v951, %v960
    %v967 = vadd.f32 %v952, %v960
    %v968 = vadd.f32 %v953, %v960
    %v969 = vadd.f32 %v954, %v960
    %970 = vst [vmem:[#allocation9] sm:$0xff] %v962
    %971 = vst [vmem:[#allocation9 + $0x8] sm:$0xff] %v963
    %972 = vst [vmem:[#allocation9 + $0x10] sm:$0xff] %v964
    %973 = vst [vmem:[#allocation9 + $0x18] sm:$0xff] %v965
    %974 = vst [vmem:[#allocation9 + $0x20] sm:$0xff] %v966
    %975 = vst [vmem:[#allocation9 + $0x28] sm:$0xff] %v967
    %976 = vst [vmem:[#allocation9 + $0x30] sm:$0xff] %v968
    %977 = vst [vmem:[#allocation9 + $0x38] sm:$0xff] %v969
    %v982 = vunpack.c.l.b16 %v91
    %v983 = vunpack.c.h.b16 %v91
    %v984 = vunpack.c.l.b16 %v92
    %v985 = vunpack.c.h.b16 %v92
    %v986 = vunpack.c.l.b16 %v93
    %v987 = vunpack.c.h.b16 %v93
    %v988 = vunpack.c.l.b16 %v94
    %v989 = vunpack.c.h.b16 %v94
    %v990 = vpack.c.b16 %v982, %v982
    %v991 = vpack.c.b16 %v983, %v983
    %v992 = vpack.c.b16 %v984, %v984
    %v993 = vpack.c.b16 %v985, %v985
    %v994 = vpack.c.b16 %v986, %v986
    %v995 = vpack.c.b16 %v987, %v987
    %v996 = vpack.c.b16 %v988, %v988
    %v997 = vpack.c.b16 %v989, %v989
    %1006 = vst [vmem:[#allocation8] sm:$0xf] %v990
    %1007 = vst [vmem:[#allocation8 + $0x4] sm:$0xf] %v991
    %1008 = vst [vmem:[#allocation8 + $0x8] sm:$0xf] %v992
    %1009 = vst [vmem:[#allocation8 + $0xc] sm:$0xf] %v993
    %1010 = vst [vmem:[#allocation8 + $0x10] sm:$0xf] %v994
    %1011 = vst [vmem:[#allocation8 + $0x14] sm:$0xf] %v995
    %1012 = vst [vmem:[#allocation8 + $0x18] sm:$0xf] %v996
    %1013 = vst [vmem:[#allocation8 + $0x1c] sm:$0xf] %v997
    // Predicated region
    $region34: #{_ssm_scan_call.1} parent=1 // pred_check
      _
    $region35: #{_ssm_scan_call.1} parent=1 // pred_check_branch
      %1015 = sbr.rel (0) target = $region37
    $region36: #{_ssm_scan_call.1} parent=1 // pred_region
      %s1017 = ssub.s32 512, 512
      %1018 = vsyncadd [#allocation4], %s1017
      %s1019 = sshll.u32 [#allocation8], 4
      %s1020 = int_to_ptr.vmem [resolvable:$true] %s1019
      %1025 = dma.vmem_to_hbm [thread:$0]  %s1020, 512, %s4, [#allocation4], 64, 64, 4
    $region37: #{_ssm_scan_call.1} parent=1 // pred_fallthru
      _
    // Predicated region
    $region38: #{_ssm_scan_call.1} parent=1 // pred_check
      _
    $region39: #{_ssm_scan_call.1} parent=1 // pred_check_branch
      %1027 = sbr.rel (0) target = $region41
    $region40: #{_ssm_scan_call.1} parent=1 // pred_region
      %s1029 = ssub.s32 1024, 1024
      %1030 = vsyncadd [#allocation10], %s1029
      %s1031 = sshll.u32 [#allocation9], 4
      %s1032 = int_to_ptr.vmem [resolvable:$true] %s1031
      %1037 = dma.vmem_to_hbm [thread:$0]  %s1032, 1024, %s5, [#allocation10], 128, 128, 8
    $region41: #{_ssm_scan_call.1} parent=1 // pred_fallthru
      _
    // Predicated region
    $region42: #{_ssm_scan_call.1} parent=1 // pred_check
      _
    $region43: #{_ssm_scan_call.1} parent=1 // pred_check_branch
      %1039 = sbr.rel (0) target = $region45
    $region44: #{_ssm_scan_call.1} parent=1 // pred_region
      %1040 = dma.done [#allocation4], 512
    $region45: #{_ssm_scan_call.1} parent=1 // pred_fallthru
      _
    // Predicated region
    $region46: #{_ssm_scan_call.1} parent=1 // pred_check
      _
    $region47: #{_ssm_scan_call.1} parent=1 // pred_check_branch
      %1042 = sbr.rel (0) target = $region49
    $region48: #{_ssm_scan_call.1} parent=1 // pred_region
      %1043 = dma.done [#allocation10], 1024
    $region49: #{_ssm_scan_call.1} parent=1 // pred_fallthru
      _
    %1044 = vsyncpa [#allocation3], 1
    %1045 = vsyncpa [#allocation6], 1
    %1046 = vsyncpa [#allocation4], 1
    %1047 = vsyncpa [#allocation10], 1

</llo_original>
